<compile_context>
chip_gen: v7x
topology: tpu7x:2x2x1
jax: 0.10.0
libtpu: 0.0.40
codegen_flags: <defaults>
</compile_context>

<pallas_src>
import functools

import jax
import jax.numpy as jnp
from jax.experimental import pallas as pl
from jax.experimental.pallas import tpu as pltpu


def _round_up(x, m):
    return ((x + m - 1) // m) * m


def _default_tanh_dtype():
    """bf16 tanh on chips with a bf16 EUP (v6e/v7x); f32 on older chips."""
    try:
        kind = jax.devices()[0].device_kind.lower()
    except Exception:
        return jnp.float32
    if any(v in kind for v in ("v2", "v3", "v4", "v5")):
        return jnp.float32
    return jnp.bfloat16


def _vmem_budget_bytes():
    """~72% of physical VMEM (headroom for Mosaic internal scratch)."""
    cap = 0
    try:
        info = pltpu.get_tpu_info()
        cap = int(getattr(info, "vmem_capacity_bytes", 0) or 0)
    except Exception:
        cap = 0
    if cap <= 0:
        cap = 128 << 20          # v5e / v6e default
    return int(cap * 0.72)


def _classifier_kernel(x_ref, w_ref, b_ref, o_ref, *, tanh_dtype):
    # tanh on the EUP (bf16 on v6e/v7x, f32 on v5e), MXU matmul with a
    # pre-cast W^T block and f32 accumulation, bias folded in f32.
    x = jnp.tanh(x_ref[...].astype(tanh_dtype)).astype(w_ref.dtype)  # [tm, H_pad]
    acc = jax.lax.dot_general(
        x, w_ref[...],                                  # [tm,H_pad] @ [H_pad,tn]
        dimension_numbers=(((1,), (0,)), ((), ())),
        preferred_element_type=jnp.float32,
    )
    o_ref[...] = (acc + b_ref[...]).astype(o_ref.dtype)


def prepare_classifier_params(weight, bias, matmul_dtype=jnp.bfloat16):
    """Hoisted parameter prep (call ONCE at load time, not per forward).

    weight: [C, H] (PyTorch nn.Linear layout), bias: [C]
      -> w_t  [H_pad, C_pad] in matmul_dtype  (pre-transposed, lane-aligned)
         b_row [1, C_pad] float32
    Zero padding keeps padded rows/lanes exactly inert (tanh(0) = 0).
    """
    C, H = weight.shape
    assert bias.shape == (C,)
    H_pad = H if H % 128 == 0 else _round_up(H, 128)
    C_pad = C if C % 128 == 0 else _round_up(C, 128)

    w_t = weight.T.astype(matmul_dtype)
    if (H_pad, C_pad) != (H, C):
        w_t = jnp.zeros((H_pad, C_pad), matmul_dtype).at[:H, :C].set(w_t)

    b_row = bias.astype(jnp.float32).reshape(1, C)
    if C_pad != C:
        b_row = jnp.zeros((1, C_pad), jnp.float32).at[:, :C].set(b_row)
    return w_t, b_row


def classifier_forward(feature, w_t, bias_row, *, num_class=None,
                       out_dtype=None, block_rows=512, tanh_dtype=None):
    """out = tanh(feature) @ weight.T + bias, using pre-prepared params.

    feature: [B, H];  w_t: [H_pad, C_pad] (from prepare_classifier_params);
    bias_row: [1, C_pad] f32.  Returns [B, num_class].
    """
    B, H = feature.shape
    H_pad, C_pad = w_t.shape
    assert bias_row.shape == (1, C_pad)
    assert H <= H_pad
    if num_class is None:
        num_class = C_pad
    out_dtype = jnp.dtype(out_dtype) if out_dtype is not None else feature.dtype
    if tanh_dtype is None:
        tanh_dtype = _default_tanh_dtype()

    # Only pad the hidden axis when it isn't lane-aligned (tanh(0)=0 keeps the
    # padded columns inert); the batch axis is never padded.
    if H != H_pad:
        feature = jnp.pad(feature, ((0, 0), (0, H_pad - H)))

    budget = _vmem_budget_bytes()
    matmul_itemsize = jnp.dtype(w_t.dtype).itemsize
    x_itemsize = jnp.dtype(feature.dtype).itemsize
    out_itemsize = jnp.dtype(out_dtype).itemsize

    # ---- C (N) tiling: keep W^T resident unless VMEM forces tiling --------
    n_lanes = C_pad // 128
    tn_lanes = n_lanes
    while tn_lanes > 1:
        bufs = 1 if tn_lanes == n_lanes else 2   # resident block -> 1 buffer
        if bufs * H_pad * tn_lanes * 128 * matmul_itemsize <= int(0.4 * budget):
            break
        nxt = tn_lanes - 1
        while nxt > 1 and n_lanes % nxt != 0:    # next largest divisor
            nxt -= 1
        tn_lanes = nxt
    tn = tn_lanes * 128
    nc = C_pad // tn
    w_bufs = 1 if nc == 1 else 2

    # ---- batch tiling ------------------------------------------------------
    tm = min(_round_up(block_rows, 8), _round_up(B, 8))
    if nc == 1 and tm >= B and B >= 16:
        # Guarantee >= 2 batch steps so both v7x TensorCores get work.
        tm = _round_up(pl.cdiv(B, 2), 8)
    w_bytes = w_bufs * H_pad * tn * matmul_itemsize + w_bufs * tn * 4
    per_row = 2 * H_pad * x_itemsize + 2 * tn * out_itemsize
    max_tm = max(8, int((budget - w_bytes) // per_row) // 8 * 8)
    tm = max(8, min(tm, max_tm))
    if tm >= B:
        tm = B                     # block equals full batch dim (always legal)
    nb = pl.cdiv(B, tm)
    # TODO(synk): add a K (hidden) grid axis + f32 VMEM accumulator for hidden
    # sizes too large to fit a single (tm, H_pad) tile in VMEM.

    usage = (2 * tm * H_pad * x_itemsize
             + 2 * tm * tn * out_itemsize
             + w_bytes
             + (1 << 20))
    vmem_limit = int(min(max(2 * usage, 16 << 20), max(budget, usage)))

    kernel = functools.partial(_classifier_kernel, tanh_dtype=tanh_dtype)
    out_shape = jax.ShapeDtypeStruct((B, C_pad), out_dtype)

    def _w_spec(single_buffer):
        if single_buffer:
            return pl.BlockSpec((H_pad, tn), lambda i, j: (0, j),
                                pipeline_mode=pl.Buffered(1))
        return pl.BlockSpec((H_pad, tn), lambda i, j: (0, j))

    def _b_spec(single_buffer):
        if single_buffer:
            return pl.BlockSpec((1, tn), lambda i, j: (0, j),
                                pipeline_mode=pl.Buffered(1))
        return pl.BlockSpec((1, tn), lambda i, j: (0, j))

    def _run(single_buffer):
        return pl.pallas_call(
            kernel,
            out_shape=out_shape,
            grid_spec=pltpu.PrefetchScalarGridSpec(
                num_scalar_prefetch=0,
                grid=(nb, nc),
                in_specs=[
                    pl.BlockSpec((tm, H_pad), lambda i, j: (i, 0)),  # activations
                    _w_spec(single_buffer),                          # W^T
                    _b_spec(single_buffer),                          # bias
                ],
                out_specs=pl.BlockSpec((tm, tn), lambda i, j: (i, j)),
            ),
            compiler_params=pltpu.CompilerParams(
                dimension_semantics=("parallel", "parallel"),
                vmem_limit_bytes=vmem_limit,
            ),
        )(feature, w_t, bias_row)

    # Weight/bias blocks are grid-constant when nc == 1: single-buffer them to
    # halve resident weight VMEM; fall back if pipeline_mode is unsupported.
    if nc == 1:
        try:
            out = _run(True)
        except Exception:
            out = _run(False)
    else:
        out = _run(False)

    if num_class != C_pad:
        out = out[:, :num_class]
    return out


if __name__ == "__main__":
    # Small shapes consistent with the module: batch=8, hidden_size=32, num_class=4
    B, H, C = 8, 32, 4

    key = jax.random.PRNGKey(0)
    k_feat, k_w = jax.random.split(key)

    feature = jax.random.normal(k_feat, (B, H), dtype=jnp.float32)

    # Deterministic parameter init matching Classifier.init_weights():
    #   weight ~ U(-0.02, 0.02), bias = 0
    initrange = 0.02
    weight = jax.random.uniform(k_w, (C, H), dtype=jnp.float32,
                                minval=-initrange, maxval=initrange)
    bias = jnp.zeros((C,), dtype=jnp.float32)

    # Parameter prep is hoisted out of the per-call path (done once).
    w_t, b_row = prepare_classifier_params(weight, bias)

    out = classifier_forward(feature, w_t, b_row, num_class=C)
    out = jax.block_until_ready(out)
    assert out.shape == (B, C)

    # Reference matching the kernel numerics (same tanh dtype, bf16 operands,
    # f32 accumulation).
    td = _default_tanh_dtype()
    x_q = jnp.tanh(feature.astype(td)).astype(jnp.bfloat16).astype(jnp.float32)
    w_q = weight.astype(jnp.bfloat16).astype(jnp.float32)
    ref_match = x_q @ w_q.T + bias
    assert jnp.allclose(out, ref_match, atol=1e-4, rtol=1e-3), \
        "mismatch vs kernel-matching reference"

    # Loose sanity check against the pure-f32 PyTorch-equivalent forward.
    ref_f32 = jnp.tanh(feature) @ weight.T + bias
    assert jnp.allclose(out, ref_f32, atol=1e-2, rtol=5e-2), \
        "mismatch vs f32 reference"

    print("KERNEL_OK")
</pallas_src>

<mosaic_0001>
module attributes {stable_mosaic.version = 11 : i64} {
  func.func @_classifier_kernel(%arg0: i32, %arg1: i32, %arg2: memref<8x128xf32, #tpu.memory_space<vmem>>, %arg3: memref<128x128xbf16, #tpu.memory_space<vmem>>, %arg4: memref<1x128xf32, #tpu.memory_space<vmem>>, %arg5: memref<8x128xf32, #tpu.memory_space<vmem>>) attributes {dimension_semantics = [#tpu.dimension_semantics<parallel>, #tpu.dimension_semantics<parallel>], iteration_bounds = array<i64: 1, 1>, scalar_prefetch = 0 : i64, scratch_operands = 0 : i64, tpu.core_type = #tpu.core_type<tc>, window_params = [{transform_indices = @transform_0, window_bounds = array<i64: 8, 128>}, {pipeline_mode = #tpu.pipeline_mode<synchronous>, transform_indices = @transform_1, window_bounds = array<i64: 128, 128>}, {pipeline_mode = #tpu.pipeline_mode<synchronous>, transform_indices = @transform_2, window_bounds = array<i64: 1, 128>}, {transform_indices = @transform_3, window_bounds = array<i64: 8, 128>}]} {
    %c0 = arith.constant 0 : index
    %c0_0 = arith.constant 0 : index
    %0 = vector.load %arg2[%c0, %c0_0] : memref<8x128xf32, #tpu.memory_space<vmem>>, vector<8x128xf32>
    %1 = arith.truncf %0 : vector<8x128xf32> to vector<8x128xbf16>
    %2 = math.tanh %1 : vector<8x128xbf16>
    %c0_1 = arith.constant 0 : index
    %c0_2 = arith.constant 0 : index
    %3 = vector.load %arg3[%c0_1, %c0_2] : memref<128x128xbf16, #tpu.memory_space<vmem>>, vector<128x128xbf16>
    %cst = arith.constant dense<0.000000e+00> : vector<8x128xf32>
    %4 = tpu.matmul %2, %3, %cst {dimension_numbers = #tpu.dot_dimension_numbers<[1], [0], [0], [1], [0, 0, 1, 1], [], []>} : vector<8x128xbf16>, vector<128x128xbf16>, vector<8x128xf32> -> vector<8x128xf32>
    %c0_3 = arith.constant 0 : index
    %c0_4 = arith.constant 0 : index
    %5 = vector.load %arg4[%c0_3, %c0_4] : memref<1x128xf32, #tpu.memory_space<vmem>>, vector<1x128xf32>
    %6 = vector.broadcast %5 : vector<1x128xf32> to vector<8x128xf32>
    %7 = arith.addf %4, %6 : vector<8x128xf32>
    %c0_5 = arith.constant 0 : index
    %c0_6 = arith.constant 0 : index
    %8 = vector.load %arg5[%c0_5, %c0_6] : memref<8x128xf32, #tpu.memory_space<vmem>>, vector<8x128xf32>
    tpu.vector_store %arg5[%c0_5, %c0_6], %7 {strides = array<i32>} : memref<8x128xf32, #tpu.memory_space<vmem>>, vector<8x128xf32>,
    return
  }
  func.func @transform_0(%arg0: i32, %arg1: i32) -> (i32, i32) {
    %c0_i32 = arith.constant 0 : i32
    %c0_i32_0 = arith.constant 0 : i32
    return %arg0, %c0_i32 : i32, i32
  }
  func.func @transform_1(%arg0: i32, %arg1: i32) -> (i32, i32) {
    %c0_i32 = arith.constant 0 : i32
    %c0_i32_0 = arith.constant 0 : i32
    return %c0_i32, %arg1 : i32, i32
  }
  func.func @transform_2(%arg0: i32, %arg1: i32) -> (i32, i32) {
    %c0_i32 = arith.constant 0 : i32
    %c0_i32_0 = arith.constant 0 : i32
    return %c0_i32, %arg1 : i32, i32
  }
  func.func @transform_3(%arg0: i32, %arg1: i32) -> (i32, i32) {
    %c0_i32 = arith.constant 0 : i32
    return %arg0, %arg1 : i32, i32
  }
}

module attributes {stable_mosaic.version = 11 : i64} {
  func.func @_classifier_kernel(%arg0: i32, %arg1: i32, %arg2: memref<8x128xf32, #tpu.memory_space<vmem>>, %arg3: memref<128x128xbf16, #tpu.memory_space<vmem>>, %arg4: memref<1x128xf32, #tpu.memory_space<vmem>>, %arg5: memref<8x128xf32, #tpu.memory_space<vmem>>) attributes {dimension_semantics = [#tpu.dimension_semantics<parallel>, #tpu.dimension_semantics<parallel>], iteration_bounds = array<i64: 1, 1>, scalar_prefetch = 0 : i64, scratch_operands = 0 : i64, tpu.core_type = #tpu.core_type<tc>, window_params = [{transform_indices = @transform_0, window_bounds = array<i64: 8, 128>}, {transform_indices = @transform_1, window_bounds = array<i64: 128, 128>}, {transform_indices = @transform_2, window_bounds = array<i64: 1, 128>}, {transform_indices = @transform_3, window_bounds = array<i64: 8, 128>}]} {
    %c0 = arith.constant 0 : index
    %c0_0 = arith.constant 0 : index
    %0 = vector.load %arg2[%c0, %c0_0] : memref<8x128xf32, #tpu.memory_space<vmem>>, vector<8x128xf32>
    %1 = arith.truncf %0 : vector<8x128xf32> to vector<8x128xbf16>
    %2 = math.tanh %1 : vector<8x128xbf16>
    %c0_1 = arith.constant 0 : index
    %c0_2 = arith.constant 0 : index
    %3 = vector.load %arg3[%c0_1, %c0_2] : memref<128x128xbf16, #tpu.memory_space<vmem>>, vector<128x128xbf16>
    %cst = arith.constant dense<0.000000e+00> : vector<8x128xf32>
    %4 = tpu.matmul %2, %3, %cst {dimension_numbers = #tpu.dot_dimension_numbers<[1], [0], [0], [1], [0, 0, 1, 1], [], []>} : vector<8x128xbf16>, vector<128x128xbf16>, vector<8x128xf32> -> vector<8x128xf32>
    %c0_3 = arith.constant 0 : index
    %c0_4 = arith.constant 0 : index
    %5 = vector.load %arg4[%c0_3, %c0_4] : memref<1x128xf32, #tpu.memory_space<vmem>>, vector<1x128xf32>
    %6 = vector.broadcast %5 : vector<1x128xf32> to vector<8x128xf32>
    %7 = arith.addf %4, %6 : vector<8x128xf32>
    %c0_5 = arith.constant 0 : index
    %c0_6 = arith.constant 0 : index
    %8 = vector.load %arg5[%c0_5, %c0_6] : memref<8x128xf32, #tpu.memory_space<vmem>>, vector<8x128xf32>
    tpu.vector_store %arg5[%c0_5, %c0_6], %7 {strides = array<i32>} : memref<8x128xf32, #tpu.memory_space<vmem>>, vector<8x128xf32>,
    return
  }
  func.func @transform_0(%arg0: i32, %arg1: i32) -> (i32, i32) {
    %c0_i32 = arith.constant 0 : i32
    %c0_i32_0 = arith.constant 0 : i32
    return %arg0, %c0_i32 : i32, i32
  }
  func.func @transform_1(%arg0: i32, %arg1: i32) -> (i32, i32) {
    %c0_i32 = arith.constant 0 : i32
    %c0_i32_0 = arith.constant 0 : i32
    return %c0_i32, %arg1 : i32, i32
  }
  func.func @transform_2(%arg0: i32, %arg1: i32) -> (i32, i32) {
    %c0_i32 = arith.constant 0 : i32
    %c0_i32_0 = arith.constant 0 : i32
    return %c0_i32, %arg1 : i32, i32
  }
  func.func @transform_3(%arg0: i32, %arg1: i32) -> (i32, i32) {
    %c0_i32 = arith.constant 0 : i32
    return %arg0, %arg1 : i32, i32
  }
}

</mosaic_0001>

<llo_original>
// kernel: tpu_custom_call.1
$region0: #{tpu_custom_call.1}
  #allocation0 [shape = 'u32[]', space=smem, size = 0x4, offset = 0x4, fixed_abs, tag = 'smem constant byte address 0x4 - core index']
  #allocation1 [shape = 'u32[144,128]{1,0:T(1,128)}', space=vmem, size = 0x12000, scoped, tag = 'internal scratch']
  %s0 = inlined_call_operand.hbm [shape: f32[8,128], index: 0, kind: input, shape index: {}]
  %s1 = inlined_call_operand.hbm [shape: bf16[128,128], index: 1, kind: input, shape index: {}]
  %s2 = inlined_call_operand.vmem [shape: f32[1,128], index: 2, kind: input, shape index: {}]
  %s3 = inlined_call_operand.hbm [shape: f32[8,128], index: 3, kind: output, shape index: {}]
  %s4 = sld [smem:[#allocation0]]
  $region30: #{tpu_custom_call.1} parent=0
    _
  %s6 = ssub.s32 1, %s4
  %s7 = scalar_select 0, %s6, %s4
  $region1: #{tpu_custom_call.1} parent=0
    #allocation2 [shape = 'u8[4096]{0}', space=vmem, size = 0x1000, scoped, tag = 'input window, operand 0, single buffered']
    #allocation3 [shape = 's32[1]{0}', space=sflag, size = 0x4, scoped, tag = 'scoped memory for tpu_custom_call.1']
    #allocation4 [shape = 's32[1]{0}', space=sflag, size = 0x4, scoped, tag = 'scoped memory for tpu_custom_call.1']
    #allocation5 [shape = 'u8[32768]{0}', space=vmem, size = 0x8000, scoped, tag = 'input window, operand 1, single buffered']
    #allocation6 [shape = 's32[1]{0}', space=sflag, size = 0x4, scoped, tag = 'scoped memory for tpu_custom_call.1']
    #allocation7 [shape = 'u8[4096]{0}', space=vmem, size = 0x1000, scoped, tag = 'output window, operand 0, single buffered']
    %8 = vsyncpa [#allocation3], 0
    %9 = vsyncpa [#allocation6], 0
    %10 = vsyncpa [#allocation4], 0
    // Predicated region
    $region2: #{tpu_custom_call.1} parent=1 // pred_check
      _
    $region3: #{tpu_custom_call.1} parent=1 // pred_check_branch
      %12 = sbr.rel (0) target = $region5
    $region4: #{tpu_custom_call.1} parent=1 // pred_region
      %s14 = ssub.s32 128, 128
      %15 = vsyncadd [#allocation3], %s14
      %s17 = sshll.u32 [#allocation2], 4
      %s18 = int_to_ptr.vmem [resolvable:$true] %s17
      %20 = dma.hbm_to_vmem [thread:$0]  %s0, 128, %s18, [#allocation3]
    $region5: #{tpu_custom_call.1} parent=1 // pred_fallthru
      _
    // Predicated region
    $region6: #{tpu_custom_call.1} parent=1 // pred_check
      _
    $region7: #{tpu_custom_call.1} parent=1 // pred_check_branch
      %22 = sbr.rel (0) target = $region9
    $region8: #{tpu_custom_call.1} parent=1 // pred_region
      %s24 = ssub.s32 1024, 1024
      %25 = vsyncadd [#allocation6], %s24
      %s26 = sshll.u32 [#allocation5], 4
      %s27 = int_to_ptr.vmem [resolvable:$true] %s26
      %32 = dma.hbm_to_vmem [thread:$0]  %s1, 1024, %s27, [#allocation6], 64, 64, 4
    $region9: #{tpu_custom_call.1} parent=1 // pred_fallthru
      _
    // Predicated region
    $region10: #{tpu_custom_call.1} parent=1 // pred_check
      _
    $region11: #{tpu_custom_call.1} parent=1 // pred_check_branch
      %34 = sbr.rel (0) target = $region13
    $region12: #{tpu_custom_call.1} parent=1 // pred_region
      _
    $region13: #{tpu_custom_call.1} parent=1 // pred_fallthru
      _
    // Predicated region
    $region14: #{tpu_custom_call.1} parent=1 // pred_check
      _
    $region15: #{tpu_custom_call.1} parent=1 // pred_check_branch
      %36 = sbr.rel (0) target = $region17
    $region16: #{tpu_custom_call.1} parent=1 // pred_region
      %37 = dma.done [#allocation3], 128
    $region17: #{tpu_custom_call.1} parent=1 // pred_fallthru
      _
    // Predicated region
    $region18: #{tpu_custom_call.1} parent=1 // pred_check
      _
    $region19: #{tpu_custom_call.1} parent=1 // pred_check_branch
      %39 = sbr.rel (0) target = $region21
    $region20: #{tpu_custom_call.1} parent=1 // pred_region
      %40 = dma.done [#allocation6], 1024
    $region21: #{tpu_custom_call.1} parent=1 // pred_fallthru
      _
    %v42 = vld [vmem:[#allocation2] sm:$0xff]
    %v43 = vpack.c.bf16 %v42, %v42
    %v44 = vtanh.bf16.pop %v43
    %v45 = vld [vmem:[#allocation5] sm:$0xf]
    %v46 = vld [vmem:[#allocation5 + $0x4] sm:$0xf]
    %v47 = vld [vmem:[#allocation5 + $0x8] sm:$0xf]
    %v48 = vld [vmem:[#allocation5 + $0xc] sm:$0xf]
    %v49 = vld [vmem:[#allocation5 + $0x10] sm:$0xf]
    %v50 = vld [vmem:[#allocation5 + $0x14] sm:$0xf]
    %v51 = vld [vmem:[#allocation5 + $0x18] sm:$0xf]
    %v52 = vld [vmem:[#allocation5 + $0x1c] sm:$0xf]
    %v53 = vld [vmem:[#allocation5 + $0x20] sm:$0xf]
    %v54 = vld [vmem:[#allocation5 + $0x24] sm:$0xf]
    %v55 = vld [vmem:[#allocation5 + $0x28] sm:$0xf]
    %v56 = vld [vmem:[#allocation5 + $0x2c] sm:$0xf]
    %v57 = vld [vmem:[#allocation5 + $0x30] sm:$0xf]
    %v58 = vld [vmem:[#allocation5 + $0x34] sm:$0xf]
    %v59 = vld [vmem:[#allocation5 + $0x38] sm:$0xf]
    %v60 = vld [vmem:[#allocation5 + $0x3c] sm:$0xf]
    %v61 = vld [vmem:[%s2] sm:$0x1]
    %v63 = vlaneseq
    %v64 = vshrl.u32 %v63, 7
    %v65 = vsub.s32 0, %v64
    %v66 = vrot.slane %v61, %v65
    %v84 = vunpack.c.l.b16 %v45
    %v85 = vunpack.c.l.b16 %v46
    %v86 = vunpack.c.l.b16 %v47
    %v87 = vunpack.c.l.b16 %v48
    %v88 = vunpack.c.l.b16 %v49
    %v89 = vunpack.c.l.b16 %v50
    %v90 = vunpack.c.l.b16 %v51
    %v91 = vunpack.c.l.b16 %v52
    %v92 = vunpack.c.l.b16 %v53
    %v93 = vunpack.c.l.b16 %v54
    %v94 = vunpack.c.l.b16 %v55
    %v95 = vunpack.c.l.b16 %v56
    %v96 = vunpack.c.l.b16 %v57
    %v97 = vunpack.c.l.b16 %v58
    %v98 = vunpack.c.l.b16 %v59
    %v99 = vunpack.c.l.b16 %v60
    %v100 = vpack.c.b16 %v85, %v84
    %v101 = vpack.c.b16 %v87, %v86
    %v102 = vpack.c.b16 %v89, %v88
    %v103 = vpack.c.b16 %v91, %v90
    %v104 = vpack.c.b16 %v93, %v92
    %v105 = vpack.c.b16 %v95, %v94
    %v106 = vpack.c.b16 %v97, %v96
    %v107 = vpack.c.b16 %v99, %v98
    %116 = vmatprep.subr.bf16.mxu0 0
    %117 = vmatpush1.bf16.msra.mxu0 %v100
    %118 = vmatprep.subr.bf16.mxu0 0
    %119 = vmatpush1.bf16.msra.mxu0 %v101
    %120 = vmatprep.subr.bf16.mxu0 0
    %121 = vmatpush1.bf16.msra.mxu0 %v102
    %122 = vmatprep.subr.bf16.mxu0 0
    %123 = vmatpush1.bf16.msra.mxu0 %v103
    %124 = vmatprep.subr.bf16.mxu0 0
    %125 = vmatpush1.bf16.msra.mxu0 %v104
    %126 = vmatprep.subr.bf16.mxu0 0
    %127 = vmatpush1.bf16.msra.mxu0 %v105
    %128 = vmatprep.subr.bf16.mxu0 0
    %129 = vmatpush1.bf16.msra.mxu0 %v106
    %130 = vmatprep.subr.bf16.mxu0 0
    %131 = vmatpush1.bf16.msra.mxu0 %v107
    %132 = vmatprep.subr.bf16.mxu0 0
    %133 = vmatpush1.bf16.msra.mxu0 0
    %134 = vmatprep.subr.bf16.mxu0 0
    %135 = vmatpush1.bf16.msra.mxu0 0
    %136 = vmatprep.subr.bf16.mxu0 0
    %137 = vmatpush1.bf16.msra.mxu0 0
    %138 = vmatprep.subr.bf16.mxu0 0
    %139 = vmatpush1.bf16.msra.mxu0 0
    %140 = vmatprep.subr.bf16.mxu0 0
    %141 = vmatpush1.bf16.msra.mxu0 0
    %142 = vmatprep.subr.bf16.mxu0 0
    %143 = vmatpush1.bf16.msra.mxu0 0
    %144 = vmatprep.subr.bf16.mxu0 0
    %145 = vmatpush1.bf16.msra.mxu0 0
    %146 = vmatprep.subr.bf16.mxu0 0
    %147 = vmatpush1.bf16.msra.mxu0 0
    %148 = vmatprep.mubr.bf16.mxu0 0
    %149 = vmatmul.mubr.bf16.gmra.mrb[0].mxu0 %v44
    %v150 = vpop.f32.mrb[0].mxu0
    %v151 = vadd.f32 %v66, %v150
    %v152 = vpop.f32.mrb[0].mxu0
    %v153 = vpop.f32.mrb[0].mxu0
    %v154 = vpop.f32.mrb[0].mxu0
    %155 = vdwg.mxu0
    %156 = vst [vmem:[#allocation7] sm:$0xff] %v151
    // Predicated region
    $region22: #{tpu_custom_call.1} parent=1 // pred_check
      _
    $region23: #{tpu_custom_call.1} parent=1 // pred_check_branch
      %158 = sbr.rel (0) target = $region25
    $region24: #{tpu_custom_call.1} parent=1 // pred_region
      %s160 = ssub.s32 128, 128
      %161 = vsyncadd [#allocation4], %s160
      %s163 = sshll.u32 [#allocation7], 4
      %s164 = int_to_ptr.vmem [resolvable:$true] %s163
      %166 = dma.vmem_to_hbm [thread:$0]  %s164, 128, %s3, [#allocation4]
    $region25: #{tpu_custom_call.1} parent=1 // pred_fallthru
      _
    // Predicated region
    $region26: #{tpu_custom_call.1} parent=1 // pred_check
      _
    $region27: #{tpu_custom_call.1} parent=1 // pred_check_branch
      %168 = sbr.rel (0) target = $region29
    $region28: #{tpu_custom_call.1} parent=1 // pred_region
      %169 = dma.done [#allocation4], 128
    $region29: #{tpu_custom_call.1} parent=1 // pred_fallthru
      _
    %170 = vsyncpa [#allocation3], 1
    %171 = vsyncpa [#allocation6], 1
    %172 = vsyncpa [#allocation4], 1

// kernel: tpu_custom_call.1
$region0: #{tpu_custom_call.1}
  #allocation0 [shape = 'u32[]', space=smem, size = 0x4, offset = 0x4, fixed_abs, tag = 'smem constant byte address 0x4 - core index']
  #allocation1 [shape = 'u32[144,128]{1,0:T(1,128)}', space=vmem, size = 0x12000, scoped, tag = 'internal scratch']
  %s0 = inlined_call_operand.hbm [shape: f32[8,128], index: 0, kind: input, shape index: {}]
  %s1 = inlined_call_operand.hbm [shape: bf16[128,128], index: 1, kind: input, shape index: {}]
  %s2 = inlined_call_operand.vmem [shape: f32[1,128], index: 2, kind: input, shape index: {}]
  %s3 = inlined_call_operand.hbm [shape: f32[8,128], index: 3, kind: output, shape index: {}]
  %s4 = sld [smem:[#allocation0]]
  $region30: #{tpu_custom_call.1} parent=0
    _
  %s6 = ssub.s32 1, %s4
  %s7 = scalar_select 0, %s6, %s4
  $region1: #{tpu_custom_call.1} parent=0
    #allocation2 [shape = 'u8[4096]{0}', space=vmem, size = 0x1000, scoped, tag = 'input window, operand 0, single buffered']
    #allocation3 [shape = 's32[1]{0}', space=sflag, size = 0x4, scoped, tag = 'scoped memory for tpu_custom_call.1']
    #allocation4 [shape = 's32[1]{0}', space=sflag, size = 0x4, scoped, tag = 'scoped memory for tpu_custom_call.1']
    #allocation5 [shape = 'u8[32768]{0}', space=vmem, size = 0x8000, scoped, tag = 'input window, operand 1, single buffered']
    #allocation6 [shape = 's32[1]{0}', space=sflag, size = 0x4, scoped, tag = 'scoped memory for tpu_custom_call.1']
    #allocation7 [shape = 'u8[4096]{0}', space=vmem, size = 0x1000, scoped, tag = 'output window, operand 0, single buffered']
    %8 = vsyncpa [#allocation3], 0
    %9 = vsyncpa [#allocation6], 0
    %10 = vsyncpa [#allocation4], 0
    // Predicated region
    $region2: #{tpu_custom_call.1} parent=1 // pred_check
      _
    $region3: #{tpu_custom_call.1} parent=1 // pred_check_branch
      %12 = sbr.rel (0) target = $region5
    $region4: #{tpu_custom_call.1} parent=1 // pred_region
      %s14 = ssub.s32 128, 128
      %15 = vsyncadd [#allocation3], %s14
      %s17 = sshll.u32 [#allocation2], 4
      %s18 = int_to_ptr.vmem [resolvable:$true] %s17
      %20 = dma.hbm_to_vmem [thread:$0]  %s0, 128, %s18, [#allocation3]
    $region5: #{tpu_custom_call.1} parent=1 // pred_fallthru
      _
    // Predicated region
    $region6: #{tpu_custom_call.1} parent=1 // pred_check
      _
    $region7: #{tpu_custom_call.1} parent=1 // pred_check_branch
      %22 = sbr.rel (0) target = $region9
    $region8: #{tpu_custom_call.1} parent=1 // pred_region
      %s24 = ssub.s32 1024, 1024
      %25 = vsyncadd [#allocation6], %s24
      %s26 = sshll.u32 [#allocation5], 4
      %s27 = int_to_ptr.vmem [resolvable:$true] %s26
      %32 = dma.hbm_to_vmem [thread:$0]  %s1, 1024, %s27, [#allocation6], 64, 64, 4
    $region9: #{tpu_custom_call.1} parent=1 // pred_fallthru
      _
    // Predicated region
    $region10: #{tpu_custom_call.1} parent=1 // pred_check
      _
    $region11: #{tpu_custom_call.1} parent=1 // pred_check_branch
      %34 = sbr.rel (0) target = $region13
    $region12: #{tpu_custom_call.1} parent=1 // pred_region
      _
    $region13: #{tpu_custom_call.1} parent=1 // pred_fallthru
      _
    // Predicated region
    $region14: #{tpu_custom_call.1} parent=1 // pred_check
      _
    $region15: #{tpu_custom_call.1} parent=1 // pred_check_branch
      %36 = sbr.rel (0) target = $region17
    $region16: #{tpu_custom_call.1} parent=1 // pred_region
      %37 = dma.done [#allocation3], 128
    $region17: #{tpu_custom_call.1} parent=1 // pred_fallthru
      _
    // Predicated region
    $region18: #{tpu_custom_call.1} parent=1 // pred_check
      _
    $region19: #{tpu_custom_call.1} parent=1 // pred_check_branch
      %39 = sbr.rel (0) target = $region21
    $region20: #{tpu_custom_call.1} parent=1 // pred_region
      %40 = dma.done [#allocation6], 1024
    $region21: #{tpu_custom_call.1} parent=1 // pred_fallthru
      _
    %v42 = vld [vmem:[#allocation2] sm:$0xff]
    %v43 = vpack.c.bf16 %v42, %v42
    %v44 = vtanh.bf16.pop %v43
    %v45 = vld [vmem:[#allocation5] sm:$0xf]
    %v46 = vld [vmem:[#allocation5 + $0x4] sm:$0xf]
    %v47 = vld [vmem:[#allocation5 + $0x8] sm:$0xf]
    %v48 = vld [vmem:[#allocation5 + $0xc] sm:$0xf]
    %v49 = vld [vmem:[#allocation5 + $0x10] sm:$0xf]
    %v50 = vld [vmem:[#allocation5 + $0x14] sm:$0xf]
    %v51 = vld [vmem:[#allocation5 + $0x18] sm:$0xf]
    %v52 = vld [vmem:[#allocation5 + $0x1c] sm:$0xf]
    %v53 = vld [vmem:[#allocation5 + $0x20] sm:$0xf]
    %v54 = vld [vmem:[#allocation5 + $0x24] sm:$0xf]
    %v55 = vld [vmem:[#allocation5 + $0x28] sm:$0xf]
    %v56 = vld [vmem:[#allocation5 + $0x2c] sm:$0xf]
    %v57 = vld [vmem:[#allocation5 + $0x30] sm:$0xf]
    %v58 = vld [vmem:[#allocation5 + $0x34] sm:$0xf]
    %v59 = vld [vmem:[#allocation5 + $0x38] sm:$0xf]
    %v60 = vld [vmem:[#allocation5 + $0x3c] sm:$0xf]
    %v61 = vld [vmem:[%s2] sm:$0x1]
    %v63 = vlaneseq
    %v64 = vshrl.u32 %v63, 7
    %v65 = vsub.s32 0, %v64
    %v66 = vrot.slane %v61, %v65
    %v84 = vunpack.c.l.b16 %v45
    %v85 = vunpack.c.l.b16 %v46
    %v86 = vunpack.c.l.b16 %v47
    %v87 = vunpack.c.l.b16 %v48
    %v88 = vunpack.c.l.b16 %v49
    %v89 = vunpack.c.l.b16 %v50
    %v90 = vunpack.c.l.b16 %v51
    %v91 = vunpack.c.l.b16 %v52
    %v92 = vunpack.c.l.b16 %v53
    %v93 = vunpack.c.l.b16 %v54
    %v94 = vunpack.c.l.b16 %v55
    %v95 = vunpack.c.l.b16 %v56
    %v96 = vunpack.c.l.b16 %v57
    %v97 = vunpack.c.l.b16 %v58
    %v98 = vunpack.c.l.b16 %v59
    %v99 = vunpack.c.l.b16 %v60
    %v100 = vpack.c.b16 %v85, %v84
    %v101 = vpack.c.b16 %v87, %v86
    %v102 = vpack.c.b16 %v89, %v88
    %v103 = vpack.c.b16 %v91, %v90
    %v104 = vpack.c.b16 %v93, %v92
    %v105 = vpack.c.b16 %v95, %v94
    %v106 = vpack.c.b16 %v97, %v96
    %v107 = vpack.c.b16 %v99, %v98
    %116 = vmatprep.subr.bf16.mxu0 0
    %117 = vmatpush1.bf16.msra.mxu0 %v100
    %118 = vmatprep.subr.bf16.mxu0 0
    %119 = vmatpush1.bf16.msra.mxu0 %v101
    %120 = vmatprep.subr.bf16.mxu0 0
    %121 = vmatpush1.bf16.msra.mxu0 %v102
    %122 = vmatprep.subr.bf16.mxu0 0
    %123 = vmatpush1.bf16.msra.mxu0 %v103
    %124 = vmatprep.subr.bf16.mxu0 0
    %125 = vmatpush1.bf16.msra.mxu0 %v104
    %126 = vmatprep.subr.bf16.mxu0 0
    %127 = vmatpush1.bf16.msra.mxu0 %v105
    %128 = vmatprep.subr.bf16.mxu0 0
    %129 = vmatpush1.bf16.msra.mxu0 %v106
    %130 = vmatprep.subr.bf16.mxu0 0
    %131 = vmatpush1.bf16.msra.mxu0 %v107
    %132 = vmatprep.subr.bf16.mxu0 0
    %133 = vmatpush1.bf16.msra.mxu0 0
    %134 = vmatprep.subr.bf16.mxu0 0
    %135 = vmatpush1.bf16.msra.mxu0 0
    %136 = vmatprep.subr.bf16.mxu0 0
    %137 = vmatpush1.bf16.msra.mxu0 0
    %138 = vmatprep.subr.bf16.mxu0 0
    %139 = vmatpush1.bf16.msra.mxu0 0
    %140 = vmatprep.subr.bf16.mxu0 0
    %141 = vmatpush1.bf16.msra.mxu0 0
    %142 = vmatprep.subr.bf16.mxu0 0
    %143 = vmatpush1.bf16.msra.mxu0 0
    %144 = vmatprep.subr.bf16.mxu0 0
    %145 = vmatpush1.bf16.msra.mxu0 0
    %146 = vmatprep.subr.bf16.mxu0 0
    %147 = vmatpush1.bf16.msra.mxu0 0
    %148 = vmatprep.mubr.bf16.mxu0 0
    %149 = vmatmul.mubr.bf16.gmra.mrb[0].mxu0 %v44
    %v150 = vpop.f32.mrb[0].mxu0
    %v151 = vadd.f32 %v66, %v150
    %v152 = vpop.f32.mrb[0].mxu0
    %v153 = vpop.f32.mrb[0].mxu0
    %v154 = vpop.f32.mrb[0].mxu0
    %155 = vdwg.mxu0
    %156 = vst [vmem:[#allocation7] sm:$0xff] %v151
    // Predicated region
    $region22: #{tpu_custom_call.1} parent=1 // pred_check
      _
    $region23: #{tpu_custom_call.1} parent=1 // pred_check_branch
      %158 = sbr.rel (0) target = $region25
    $region24: #{tpu_custom_call.1} parent=1 // pred_region
      %s160 = ssub.s32 128, 128
      %161 = vsyncadd [#allocation4], %s160
      %s163 = sshll.u32 [#allocation7], 4
      %s164 = int_to_ptr.vmem [resolvable:$true] %s163
      %166 = dma.vmem_to_hbm [thread:$0]  %s164, 128, %s3, [#allocation4]
    $region25: #{tpu_custom_call.1} parent=1 // pred_fallthru
      _
    // Predicated region
    $region26: #{tpu_custom_call.1} parent=1 // pred_check
      _
    $region27: #{tpu_custom_call.1} parent=1 // pred_check_branch
      %168 = sbr.rel (0) target = $region29
    $region28: #{tpu_custom_call.1} parent=1 // pred_region
      %169 = dma.done [#allocation4], 128
    $region29: #{tpu_custom_call.1} parent=1 // pred_fallthru
      _
    %170 = vsyncpa [#allocation3], 1
    %171 = vsyncpa [#allocation6], 1
    %172 = vsyncpa [#allocation4], 1

</llo_original>
